<compile_context>
chip_gen: v5e
topology: v5e:2x2
jax: 0.10.0
libtpu: 0.0.40
codegen_flags: <defaults>
</compile_context>

<pallas_src>
import functools

import jax
import jax.numpy as jnp
from jax.experimental import pallas as pl
from jax.experimental.pallas import tpu as pltpu

_MIB = 1024 * 1024
_SUBLANE = 32            # covers fp32 (8) / bf16 (16) / int8+fp8 (32) packing
_DEFAULT_ROW_TILE = 4096  # ~20 MiB double-buffered for 32/32/16/8-wide f32 inputs


def _round_up(x, m):
    return ((x + m - 1) // m) * m


def _lane_pad(d):
    return _round_up(d, 128)


def _vmem_ceiling_bytes():
    """Generation-aware scoped-VMEM ceiling (~75% of per-core physical VMEM)."""
    try:
        cap = int(pltpu.get_tpu_info().vmem_capacity_bytes)
    except Exception:
        cap = 64 * _MIB          # assume the smallest per-core VMEM (v7x)
    return max(16 * _MIB, min(int(0.75 * cap), 96 * _MIB))


def _concat_kernel(zs_ref, zd_ref, rm_ref, te_ref, o_ref,
                   *, d_src, d_dst, d_msg, d_time):
    """One store per field at static lane offsets.

    Dtype promotion happens in-kernel: this kernel is purely memory bound, so
    the VPU cast and the lane-offset (masked) stores are free filler hidden
    under the DMA pipeline.
    """
    o1 = d_src
    o2 = o1 + d_dst
    o3 = o2 + d_msg
    o4 = o3 + d_time
    o_ref[:, 0:o1] = zs_ref[...].astype(o_ref.dtype)
    o_ref[:, o1:o2] = zd_ref[...].astype(o_ref.dtype)
    o_ref[:, o2:o3] = rm_ref[...].astype(o_ref.dtype)
    o_ref[:, o3:o4] = te_ref[...].astype(o_ref.dtype)


def identity_message(z_src, z_dst, raw_msg, t_enc, *,
                     row_tile=None, vmem_limit_bytes=None):
    """Pallas TPU equivalent of IdentityMessage.forward (concat on last dim)."""
    assert z_src.ndim == z_dst.ndim == raw_msg.ndim == t_enc.ndim == 2, (
        "expected [num_events, feature_dim] inputs")
    n = z_src.shape[0]
    assert z_dst.shape[0] == n and raw_msg.shape[0] == n and t_enc.shape[0] == n

    d_src, d_dst = z_src.shape[-1], z_dst.shape[-1]
    d_msg, d_time = raw_msg.shape[-1], t_enc.shape[-1]
    d_out = d_src + d_dst + d_msg + d_time
    # NOTE: torch.cat requires matching dtypes; we promote like jnp.concatenate
    # (slightly more permissive, pure copy/cast either way).
    out_dtype = jnp.result_type(z_src.dtype, z_dst.dtype, raw_msg.dtype, t_enc.dtype)

    if n == 0:
        return jnp.zeros((0, d_out), out_dtype)

    inputs = (z_src, z_dst, raw_msg, t_enc)

    # Per-row VMEM footprint of one buffer set (VMEM tiles are 128-lane padded).
    vmem_row_bytes = sum(_lane_pad(a.shape[-1]) * jnp.dtype(a.dtype).itemsize
                         for a in inputs)
    vmem_row_bytes += _lane_pad(d_out) * jnp.dtype(out_dtype).itemsize

    ceiling = _vmem_ceiling_bytes()

    # ---- Row tiling --------------------------------------------------------
    if row_tile is None:
        # Big tiles amortize the fixed per-grid-step overhead; clamp so the
        # double-buffered, 128-lane-padded footprint stays well under the
        # scoped-VMEM ceiling (x2 buffers, ~40% headroom).
        max_rows = (int(0.6 * ceiling) // (2 * vmem_row_bytes)) // _SUBLANE * _SUBLANE
        row_tile = min(_DEFAULT_ROW_TILE, max(max_rows, _SUBLANE))
        # Keep >=2 grid steps (>=8 for large N) so dimension_semantics can
        # shard the grid across both v7x TensorCores and the pipeline has depth.
        if n >= 8 * 1024:
            row_tile = min(row_tile, _round_up(pl.cdiv(n, 8), _SUBLANE))
        elif n >= 2 * _SUBLANE:
            row_tile = min(row_tile, _round_up(pl.cdiv(n, 2), _SUBLANE))
    row_tile = int(row_tile)
    if row_tile >= n:
        row_tile = n                            # block == full dim is always legal
    else:
        # Sub-tiled second-to-last dims must be sublane aligned.
        row_tile = max(_SUBLANE, (row_tile // _SUBLANE) * _SUBLANE)
    num_tiles = pl.cdiv(n, row_tile)            # ragged tail handled by Pallas clamping

    # ---- Scoped VMEM limit (double-buffered tiles + headroom, gen-aware cap) ----
    if vmem_limit_bytes is None:
        est = 2 * row_tile * vmem_row_bytes     # x2: double buffering
        vmem_limit_bytes = int(min(max(int(1.5 * est), 16 * _MIB), ceiling))

    # Advisory cost model: pure-bandwidth op, zero flops/transcendentals.
    hbm_bytes = sum(int(a.size) * jnp.dtype(a.dtype).itemsize for a in inputs)
    hbm_bytes += n * d_out * jnp.dtype(out_dtype).itemsize
    cost = pl.CostEstimate(flops=0, transcendentals=0, bytes_accessed=int(hbm_bytes))

    kernel = functools.partial(_concat_kernel, d_src=d_src, d_dst=d_dst,
                               d_msg=d_msg, d_time=d_time)

    def row_map(i):
        return (i, 0)

    return pl.pallas_call(
        kernel,
        out_shape=jax.ShapeDtypeStruct((n, d_out), out_dtype),
        grid=(num_tiles,),
        in_specs=[
            pl.BlockSpec((row_tile, d_src), row_map),
            pl.BlockSpec((row_tile, d_dst), row_map),
            pl.BlockSpec((row_tile, d_msg), row_map),
            pl.BlockSpec((row_tile, d_time), row_map),
        ],
        out_specs=pl.BlockSpec((row_tile, d_out), row_map),
        compiler_params=pltpu.CompilerParams(
            dimension_semantics=("parallel",),   # megacore sharding on v7x
            vmem_limit_bytes=int(vmem_limit_bytes)),
        cost_estimate=cost,
    )(z_src, z_dst, raw_msg, t_enc)


if __name__ == "__main__":
    # IdentityMessage(raw_msg_dim, memory_dim, time_dim)
    raw_msg_dim, memory_dim, time_dim = 16, 32, 8
    d_out = 2 * memory_dim + raw_msg_dim + time_dim

    def make_inputs(n, key):
        k1, k2, k3, k4 = jax.random.split(key, 4)
        return (jax.random.normal(k1, (n, memory_dim), dtype=jnp.float32),
                jax.random.normal(k2, (n, memory_dim), dtype=jnp.float32),
                jax.random.normal(k3, (n, raw_msg_dim), dtype=jnp.float32),
                jax.random.normal(k4, (n, time_dim), dtype=jnp.float32))

    # Case 1: tiny batch -> single full-extent block.
    args = make_inputs(8, jax.random.PRNGKey(0))
    out = jax.block_until_ready(identity_message(*args))
    ref = jnp.concatenate(args, axis=-1)
    assert out.shape == (8, d_out) and out.dtype == ref.dtype
    assert jnp.array_equal(out, ref), "Pallas concat mismatch (tiny case)"

    # Case 2: auto tiling -> 2 grid steps with a ragged last tile (1000 = 512 + 488).
    args2 = make_inputs(1000, jax.random.PRNGKey(0))
    out2 = jax.block_until_ready(identity_message(*args2))
    ref2 = jnp.concatenate(args2, axis=-1)
    assert out2.shape == (1000, d_out)
    assert jnp.array_equal(out2, ref2), "Pallas concat mismatch (auto-tiled case)"

    # Case 3: user-supplied small tile -> deeper pipelined grid (200 = 3*64 + 8).
    args3 = make_inputs(200, jax.random.PRNGKey(1))
    out3 = jax.block_until_ready(identity_message(*args3, row_tile=64))
    ref3 = jnp.concatenate(args3, axis=-1)
    assert jnp.array_equal(out3, ref3), "Pallas concat mismatch (small-tile case)"

    print("KERNEL_OK")
</pallas_src>

<mosaic_0001>
module attributes {stable_mosaic.version = 11 : i64} {
  func.func @_concat_kernel(%arg0: i32, %arg1: memref<8x32xf32, #tpu.memory_space<vmem>>, %arg2: memref<8x32xf32, #tpu.memory_space<vmem>>, %arg3: memref<8x16xf32, #tpu.memory_space<vmem>>, %arg4: memref<8x8xf32, #tpu.memory_space<vmem>>, %arg5: memref<8x88xf32, #tpu.memory_space<vmem>>) attributes {dimension_semantics = [#tpu.dimension_semantics<parallel>], iteration_bounds = array<i64: 1>, scalar_prefetch = 0 : i64, scratch_operands = 0 : i64, tpu.core_type = #tpu.core_type<tc>, window_params = [{transform_indices = @transform_0, window_bounds = array<i64: 8, 32>}, {transform_indices = @transform_1, window_bounds = array<i64: 8, 32>}, {transform_indices = @transform_2, window_bounds = array<i64: 8, 16>}, {transform_indices = @transform_3, window_bounds = array<i64: 8, 8>}, {transform_indices = @transform_4, window_bounds = array<i64: 8, 88>}]} {
    %c0 = arith.constant 0 : index
    %c0_0 = arith.constant 0 : index
    %0 = vector.load %arg1[%c0, %c0_0] : memref<8x32xf32, #tpu.memory_space<vmem>>, vector<8x32xf32>
    %c0_1 = arith.constant 0 : index
    %c0_2 = arith.constant 0 : index
    %1 = vector.load %arg5[%c0_1, %c0_2] : memref<8x88xf32, #tpu.memory_space<vmem>>, vector<8x32xf32>
    tpu.vector_store %arg5[%c0_1, %c0_2], %0 {strides = array<i32>} : memref<8x88xf32, #tpu.memory_space<vmem>>, vector<8x32xf32>,
    %c0_3 = arith.constant 0 : index
    %c0_4 = arith.constant 0 : index
    %2 = vector.load %arg2[%c0_3, %c0_4] : memref<8x32xf32, #tpu.memory_space<vmem>>, vector<8x32xf32>
    %c0_5 = arith.constant 0 : index
    %c32 = arith.constant 32 : index
    %3 = vector.load %arg5[%c0_5, %c32] : memref<8x88xf32, #tpu.memory_space<vmem>>, vector<8x32xf32>
    tpu.vector_store %arg5[%c0_5, %c32], %2 {strides = array<i32>} : memref<8x88xf32, #tpu.memory_space<vmem>>, vector<8x32xf32>,
    %c0_6 = arith.constant 0 : index
    %c0_7 = arith.constant 0 : index
    %4 = vector.load %arg3[%c0_6, %c0_7] : memref<8x16xf32, #tpu.memory_space<vmem>>, vector<8x16xf32>
    %c0_8 = arith.constant 0 : index
    %c64 = arith.constant 64 : index
    %5 = vector.load %arg5[%c0_8, %c64] : memref<8x88xf32, #tpu.memory_space<vmem>>, vector<8x16xf32>
    tpu.vector_store %arg5[%c0_8, %c64], %4 {strides = array<i32>} : memref<8x88xf32, #tpu.memory_space<vmem>>, vector<8x16xf32>,
    %c0_9 = arith.constant 0 : index
    %c0_10 = arith.constant 0 : index
    %6 = vector.load %arg4[%c0_9, %c0_10] : memref<8x8xf32, #tpu.memory_space<vmem>>, vector<8x8xf32>
    %c0_11 = arith.constant 0 : index
    %c80 = arith.constant 80 : index
    %7 = vector.load %arg5[%c0_11, %c80] : memref<8x88xf32, #tpu.memory_space<vmem>>, vector<8x8xf32>
    tpu.vector_store %arg5[%c0_11, %c80], %6 {strides = array<i32>} : memref<8x88xf32, #tpu.memory_space<vmem>>, vector<8x8xf32>,
    return
  }
  func.func @transform_0(%arg0: i32) -> (i32, i32) {
    %c0_i32 = arith.constant 0 : i32
    %c0_i32_0 = arith.constant 0 : i32
    return %arg0, %c0_i32 : i32, i32
  }
  func.func @transform_1(%arg0: i32) -> (i32, i32) {
    %c0_i32 = arith.constant 0 : i32
    %c0_i32_0 = arith.constant 0 : i32
    return %arg0, %c0_i32 : i32, i32
  }
  func.func @transform_2(%arg0: i32) -> (i32, i32) {
    %c0_i32 = arith.constant 0 : i32
    %c0_i32_0 = arith.constant 0 : i32
    return %arg0, %c0_i32 : i32, i32
  }
  func.func @transform_3(%arg0: i32) -> (i32, i32) {
    %c0_i32 = arith.constant 0 : i32
    %c0_i32_0 = arith.constant 0 : i32
    return %arg0, %c0_i32 : i32, i32
  }
  func.func @transform_4(%arg0: i32) -> (i32, i32) {
    %c0_i32 = arith.constant 0 : i32
    %c0_i32_0 = arith.constant 0 : i32
    return %arg0, %c0_i32 : i32, i32
  }
}

</mosaic_0001>

<llo_original>
// kernel: tpu_custom_call.1
$region0: #{tpu_custom_call.1}
  #allocation0 [shape = 'u32[]', space=smem, size = 0x4, offset = 0x4, fixed_abs, tag = 'smem constant byte address 0x4 - core index']
  #allocation1 [shape = 'u32[72,128]{1,0:T(1,128)}', space=vmem, size = 0x9000, scoped, tag = 'internal scratch']
  %s0 = inlined_call_operand.hbm [shape: f32[8,32], index: 0, kind: input, shape index: {}]
  %s1 = inlined_call_operand.hbm [shape: f32[8,32], index: 1, kind: input, shape index: {}]
  %s2 = inlined_call_operand.hbm [shape: f32[8,16], index: 2, kind: input, shape index: {}]
  %s3 = inlined_call_operand.hbm [shape: f32[8,8], index: 3, kind: input, shape index: {}]
  %s4 = inlined_call_operand.hbm [shape: f32[8,88], index: 4, kind: output, shape index: {}]
  %s5 = sld [smem:[#allocation0]]
  $region42: #{tpu_custom_call.1} parent=0
    _
  %s7 = ssub.s32 1, %s5
  %s8 = scalar_select 0, %s7, %s5
  $region1: #{tpu_custom_call.1} parent=0
    #allocation2 [shape = 'u8[4096]{0}', space=vmem, size = 0x1000, scoped, tag = 'input window, operand 0, single buffered']
    #allocation3 [shape = 's32[1]{0}', space=sflag, size = 0x4, scoped, tag = 'scoped memory for tpu_custom_call.1']
    #allocation4 [shape = 's32[1]{0}', space=sflag, size = 0x4, scoped, tag = 'scoped memory for tpu_custom_call.1']
    #allocation5 [shape = 'u8[4096]{0}', space=vmem, size = 0x1000, scoped, tag = 'input window, operand 1, single buffered']
    #allocation6 [shape = 's32[1]{0}', space=sflag, size = 0x4, scoped, tag = 'scoped memory for tpu_custom_call.1']
    #allocation7 [shape = 'u8[4096]{0}', space=vmem, size = 0x1000, scoped, tag = 'input window, operand 2, single buffered']
    #allocation8 [shape = 'u8[4096]{0}', space=vmem, size = 0x1000, scoped, tag = 'input window, operand 3, single buffered']
    #allocation9 [shape = 's32[1]{0}', space=sflag, size = 0x4, scoped, tag = 'scoped memory for tpu_custom_call.1']
    #allocation10 [shape = 'u8[4096]{0}', space=vmem, size = 0x1000, scoped, tag = 'output window, operand 0, single buffered']
    %9 = vsyncpa [#allocation3], 0
    %10 = vsyncpa [#allocation6], 0
    %11 = vsyncpa [#allocation9], 0
    %12 = vsyncpa [#allocation4], 0
    // Predicated region
    $region2: #{tpu_custom_call.1} parent=1 // pred_check
      _
    $region3: #{tpu_custom_call.1} parent=1 // pred_check_branch
      %14 = sbr.rel (0) target = $region5
    $region4: #{tpu_custom_call.1} parent=1 // pred_region
      %16 = vsyncadd [#allocation3], 0
      %s18 = sshll.u32 %s0, 4
      %s19 = int_to_ptr.hbm [resolvable:$true] %s18
      %s20 = sshll.u32 [#allocation2], 4
      %s21 = int_to_ptr.vmem [resolvable:$true] %s20
      %23 = dma.hbm_to_vmem [thread:$0]  %s19, 128, %s21, [#allocation3]
    $region5: #{tpu_custom_call.1} parent=1 // pred_fallthru
      _
    // Predicated region
    $region6: #{tpu_custom_call.1} parent=1 // pred_check
      _
    $region7: #{tpu_custom_call.1} parent=1 // pred_check_branch
      %25 = sbr.rel (0) target = $region9
    $region8: #{tpu_custom_call.1} parent=1 // pred_region
      %27 = vsyncadd [#allocation6], 0
      %s29 = sshll.u32 %s1, 4
      %s30 = int_to_ptr.hbm [resolvable:$true] %s29
      %s31 = sshll.u32 [#allocation5], 4
      %s32 = int_to_ptr.vmem [resolvable:$true] %s31
      %34 = dma.hbm_to_vmem [thread:$0]  %s30, 128, %s32, [#allocation6]
    $region9: #{tpu_custom_call.1} parent=1 // pred_fallthru
      _
    // Predicated region
    $region10: #{tpu_custom_call.1} parent=1 // pred_check
      _
    $region11: #{tpu_custom_call.1} parent=1 // pred_check_branch
      %36 = sbr.rel (0) target = $region13
    $region12: #{tpu_custom_call.1} parent=1 // pred_region
      %38 = vsyncadd [#allocation6], 0
      %s40 = sshll.u32 %s2, 4
      %s41 = int_to_ptr.hbm [resolvable:$true] %s40
      %s42 = sshll.u32 [#allocation7], 4
      %s43 = int_to_ptr.vmem [resolvable:$true] %s42
      %45 = dma.hbm_to_vmem [thread:$0]  %s41, 128, %s43, [#allocation6]
    $region13: #{tpu_custom_call.1} parent=1 // pred_fallthru
      _
    // Predicated region
    $region14: #{tpu_custom_call.1} parent=1 // pred_check
      _
    $region15: #{tpu_custom_call.1} parent=1 // pred_check_branch
      %47 = sbr.rel (0) target = $region17
    $region16: #{tpu_custom_call.1} parent=1 // pred_region
      %49 = vsyncadd [#allocation9], 0
      %s51 = sshll.u32 %s3, 4
      %s52 = int_to_ptr.hbm [resolvable:$true] %s51
      %s53 = sshll.u32 [#allocation8], 4
      %s54 = int_to_ptr.vmem [resolvable:$true] %s53
      %56 = dma.hbm_to_vmem [thread:$0]  %s52, 128, %s54, [#allocation9]
    $region17: #{tpu_custom_call.1} parent=1 // pred_fallthru
      _
    // Predicated region
    $region18: #{tpu_custom_call.1} parent=1 // pred_check
      _
    $region19: #{tpu_custom_call.1} parent=1 // pred_check_branch
      %58 = sbr.rel (0) target = $region21
    $region20: #{tpu_custom_call.1} parent=1 // pred_region
      %60 = dma.done [#allocation3], 128
    $region21: #{tpu_custom_call.1} parent=1 // pred_fallthru
      _
    // Predicated region
    $region22: #{tpu_custom_call.1} parent=1 // pred_check
      _
    $region23: #{tpu_custom_call.1} parent=1 // pred_check_branch
      %62 = sbr.rel (0) target = $region25
    $region24: #{tpu_custom_call.1} parent=1 // pred_region
      %64 = dma.done [#allocation6], 128
    $region25: #{tpu_custom_call.1} parent=1 // pred_fallthru
      _
    // Predicated region
    $region26: #{tpu_custom_call.1} parent=1 // pred_check
      _
    $region27: #{tpu_custom_call.1} parent=1 // pred_check_branch
      %66 = sbr.rel (0) target = $region29
    $region28: #{tpu_custom_call.1} parent=1 // pred_region
      %68 = dma.done [#allocation6], 128
    $region29: #{tpu_custom_call.1} parent=1 // pred_fallthru
      _
    // Predicated region
    $region30: #{tpu_custom_call.1} parent=1 // pred_check
      _
    $region31: #{tpu_custom_call.1} parent=1 // pred_check_branch
      %70 = sbr.rel (0) target = $region33
    $region32: #{tpu_custom_call.1} parent=1 // pred_region
      %72 = dma.done [#allocation9], 128
    $region33: #{tpu_custom_call.1} parent=1 // pred_fallthru
      _
    %v73 = vld [vmem:[#allocation2] sm:$0xff]
    %vm74 = vcmask 261120
    %75 = vst.msk [vmem:[#allocation10] sm:$0xff] %vm74, %v73
    %v76 = vld [vmem:[#allocation5] sm:$0xff]
    %78 = vrot.lane.b32.xlu0 %v76, 32
    %v79 = vpop.permute.xlu0 %78
    %vm81 = vcmask 523520
    %82 = vst.msk [vmem:[#allocation10] sm:$0xff] %vm81, %v79
    %v83 = vld [vmem:[#allocation7] sm:$0xff]
    %85 = vrot.lane.b32.xlu0 %v83, 64
    %v86 = vpop.permute.xlu0 %85
    %vm88 = vcmask 654848
    %89 = vst.msk [vmem:[#allocation10] sm:$0xff] %vm88, %v86
    %v90 = vld [vmem:[#allocation8] sm:$0xff]
    %92 = vrot.lane.b32.xlu0 %v90, 80
    %v93 = vpop.permute.xlu0 %92
    %vm95 = vcmask 720512
    %96 = vst.msk [vmem:[#allocation10] sm:$0xff] %vm95, %v93
    // Predicated region
    $region34: #{tpu_custom_call.1} parent=1 // pred_check
      _
    $region35: #{tpu_custom_call.1} parent=1 // pred_check_branch
      %98 = sbr.rel (0) target = $region37
    $region36: #{tpu_custom_call.1} parent=1 // pred_region
      %100 = vsyncadd [#allocation4], 0
      %s102 = sshll.u32 [#allocation10], 4
      %s103 = int_to_ptr.vmem [resolvable:$true] %s102
      %s104 = sshll.u32 %s4, 4
      %s105 = int_to_ptr.hbm [resolvable:$true] %s104
      %107 = dma.vmem_to_hbm [thread:$0]  %s103, 128, %s105, [#allocation4]
    $region37: #{tpu_custom_call.1} parent=1 // pred_fallthru
      _
    // Predicated region
    $region38: #{tpu_custom_call.1} parent=1 // pred_check
      _
    $region39: #{tpu_custom_call.1} parent=1 // pred_check_branch
      %109 = sbr.rel (0) target = $region41
    $region40: #{tpu_custom_call.1} parent=1 // pred_region
      %111 = dma.done [#allocation4], 128
    $region41: #{tpu_custom_call.1} parent=1 // pred_fallthru
      _
    %112 = vsyncpa [#allocation3], 1
    %113 = vsyncpa [#allocation6], 1
    %114 = vsyncpa [#allocation9], 1
    %115 = vsyncpa [#allocation4], 1

</llo_original>
